<compile_context>
chip_gen: v5e
topology: v5e:2x2
jax: 0.10.0
libtpu: 0.0.40
codegen_flags: <defaults>
</compile_context>

<pallas_src>
import jax
import jax.numpy as jnp
from jax.experimental import pallas as pl
from jax.experimental.pallas import tpu as pltpu


def receiver_kernel(sig_ref, w_fused_ref, b_fused_ref, data_ref, out_ref):
    # Single fused projection on the MXU:
    #   v[b, :] = sig[b, :] @ (W_lin1 @ W_emb) + b_lin1 @ W_emb     -> (TB, F)
    v = jnp.dot(sig_ref[...], w_fused_ref[...], preferred_element_type=jnp.float32)
    v = v + b_fused_ref[...].astype(jnp.float32)                    # (TB,F)+(1,F)

    # out[b, g] = <data[b, g, :], v[b, :]>   (VPU mul + lane-axis reduce over F;
    # the contraction is too skinny (F=32 here) to be worth MXU fill/drain).
    out = jnp.sum(data_ref[...].astype(jnp.float32) * v[:, None, :], axis=-1)

    # log_softmax over the game dimension (axis=1), all in f32.
    m = jnp.max(out, axis=1, keepdims=True)
    shifted = out - m
    lse = jnp.log(jnp.sum(jnp.exp(shifted), axis=1, keepdims=True))
    out_ref[...] = shifted - lse


def _pick_block_b(B):
    """Largest convenient batch tile; full B when small (single grid step)."""
    if B <= 512:
        return B
    for tb in (512, 256, 128, 64, 32, 16, 8):
        if B % tb == 0:
            return tb
    return B


def receiver_forward(data_receiver, w_emb, b_emb, signal, w_lin1, b_lin1,
                     *, compute_dtype=jnp.float32, block_b=None):
    """w_emb: (E, F) native PyTorch layout; w_lin1: (H, E); b_lin1: (1, E).

    b_emb is accepted for API parity with the PyTorch module but is provably a
    no-op for log_probs (constant over the game axis, cancels in log_softmax),
    so it is not sent to the kernel.  NOTE: if raw logits were ever consumed
    downstream this shortcut would not be valid.
    """
    del b_emb
    B, G, F = data_receiver.shape
    E, Fw = w_emb.shape
    assert Fw == F
    H = signal.shape[1]
    assert w_lin1.shape == (H, E)
    assert b_lin1.shape == (1, E)

    # Batch tiling.
    tb = _pick_block_b(B) if block_b is None else int(block_b)
    assert B % tb == 0, "batch must be divisible by the batch tile"
    assert tb == B or tb % 8 == 0, "partial batch tiles must be sublane-aligned (8)"
    n_tiles = B // tb

    # Wrapper-side weight fusion (f32 math, then storage cast).  One-time
    # H*E*F cost in XLA, amortized over the whole batch grid.
    w_fused = (w_lin1.astype(jnp.float32) @ w_emb.astype(jnp.float32))   # (H, F)
    b_fused = (b_lin1.astype(jnp.float32) @ w_emb.astype(jnp.float32))   # (1, F)

    data = data_receiver.astype(compute_dtype)
    sig = signal.astype(compute_dtype)
    w_f = w_fused.astype(compute_dtype)
    b_f = b_fused.astype(jnp.float32)          # tiny; keep bias in f32

    itemsize = jnp.dtype(compute_dtype).itemsize

    # Explicit VMEM budget: double-buffered per-tile blocks + resident weights,
    # capped at 64 MiB so the same tiling is safe on v7x (and far above v5e's
    # 16 MiB scoped default).
    tile_bytes = tb * G * F * itemsize + tb * H * itemsize + tb * G * 4
    weight_bytes = (H * F) * itemsize + F * 4
    vmem_needed = 2 * tile_bytes + 2 * weight_bytes + (2 << 20)
    vmem_limit = int(min(max(vmem_needed, 16 << 20), 64 << 20))
    assert vmem_needed <= (64 << 20), "batch tile too large for v7x VMEM"

    cost = pl.CostEstimate(
        flops=2 * B * H * F + 2 * B * G * F + 5 * B * G,
        transcendentals=B * G + B,             # exp per logit + log per row
        bytes_accessed=itemsize * (B * G * F + B * H + H * F) + 4 * (F + B * G),
    )

    return pl.pallas_call(
        receiver_kernel,
        out_shape=jax.ShapeDtypeStruct((B, G), jnp.float32),
        grid=(n_tiles,),
        in_specs=[
            pl.BlockSpec((tb, H), lambda i: (i, 0)),       # signal (advances with batch)
            pl.BlockSpec((H, F), lambda i: (0, 0)),        # fused weight (resident)
            pl.BlockSpec((1, F), lambda i: (0, 0)),        # fused bias   (resident)
            pl.BlockSpec((tb, G, F), lambda i: (i, 0, 0)),  # data_receiver
        ],
        out_specs=pl.BlockSpec((tb, G), lambda i: (i, 0)),
        compiler_params=pltpu.CompilerParams(
            dimension_semantics=("parallel",),             # shards across v7x's 2 TCs
            vmem_limit_bytes=vmem_limit,
        ),
        cost_estimate=cost,
    )(sig, w_f, b_f, data)


def receiver_reference(data_receiver, w_emb, b_emb, signal, w_lin1, b_lin1):
    """Exact PyTorch-order reference (embedder bias included)."""
    B, G, F = data_receiver.shape
    x = data_receiver.reshape(B * G, F) @ w_emb.T + b_emb   # (B*G, E)
    x = x.reshape(B, G, -1)
    h = signal @ w_lin1 + b_lin1                             # (B, E)
    out = jnp.einsum("bge,be->bg", x, h)
    return jax.nn.log_softmax(out, axis=1)


if __name__ == "__main__":
    # Small shapes implied by the module: batch=2, game_size=8, feature=32,
    # embedding_size=32, hidden_size=32.
    B, G, F, E, H = 2, 8, 32, 32, 32

    key = jax.random.PRNGKey(0)
    k_data, k_sig, k_we, k_be, k_wl, k_bl = jax.random.split(key, 6)

    data_receiver = jax.random.normal(k_data, (B, G, F), dtype=jnp.float32)
    signal = jax.random.normal(k_sig, (B, H), dtype=jnp.float32)

    # Parameters: embedder weight in native PyTorch (out=E, in=F) layout,
    # lin1 weight pre-transposed to (H, E) for a row-major matmul.
    w_emb = jax.random.normal(k_we, (E, F), dtype=jnp.float32) * (1.0 / F) ** 0.5
    b_emb = jax.random.normal(k_be, (1, E), dtype=jnp.float32) * 0.01
    w_lin1 = jax.random.normal(k_wl, (H, E), dtype=jnp.float32) * (1.0 / H) ** 0.5
    b_lin1 = jax.random.normal(k_bl, (1, E), dtype=jnp.float32) * 0.01

    # --- f32 path: tight check against the exact PyTorch-order reference. ---
    log_probs = receiver_forward(data_receiver, w_emb, b_emb, signal, w_lin1, b_lin1)
    log_probs = jax.block_until_ready(log_probs)
    ref = receiver_reference(data_receiver, w_emb, b_emb, signal, w_lin1, b_lin1)
    assert log_probs.shape == (B, G)
    assert jnp.allclose(log_probs, ref, atol=1e-4, rtol=1e-4), "mismatch vs reference"

    # --- bf16-storage path (halved HBM traffic, f32 accumulation/softmax). ---
    log_probs_bf16 = receiver_forward(data_receiver, w_emb, b_emb, signal,
                                      w_lin1, b_lin1, compute_dtype=jnp.bfloat16)
    log_probs_bf16 = jax.block_until_ready(log_probs_bf16)
    assert log_probs_bf16.shape == (B, G)
    assert bool(jnp.all(jnp.isfinite(log_probs_bf16)))
    # rows are valid log-prob distributions (softmax itself is done in f32)
    assert jnp.allclose(jnp.sum(jnp.exp(log_probs_bf16), axis=1), 1.0, atol=1e-5)
    assert jnp.allclose(log_probs_bf16, ref, atol=0.5), "bf16 path far from reference"

    # --- multi-tile grid path: many instances batched into ONE pallas_call, ---
    # --- exercising the (resident-weights, advancing-data) tiled pipeline.  ---
    B2 = 16
    k2_data, k2_sig = jax.random.split(jax.random.PRNGKey(1))
    data2 = jax.random.normal(k2_data, (B2, G, F), dtype=jnp.float32)
    sig2 = jax.random.normal(k2_sig, (B2, H), dtype=jnp.float32)
    out2 = receiver_forward(data2, w_emb, b_emb, sig2, w_lin1, b_lin1, block_b=8)
    out2 = jax.block_until_ready(out2)
    ref2 = receiver_reference(data2, w_emb, b_emb, sig2, w_lin1, b_lin1)
    assert out2.shape == (B2, G)
    assert jnp.allclose(out2, ref2, atol=1e-4, rtol=1e-4), "tiled path mismatch"

    print("KERNEL_OK")
</pallas_src>

<mosaic_0001>
module attributes {stable_mosaic.version = 11 : i64} {
  func.func @receiver_kernel(%arg0: i32, %arg1: memref<2x32xf32, #tpu.memory_space<vmem>>, %arg2: memref<32x32xf32, #tpu.memory_space<vmem>>, %arg3: memref<1x32xf32, #tpu.memory_space<vmem>>, %arg4: memref<2x8x32xf32, #tpu.memory_space<vmem>>, %arg5: memref<2x8xf32, #tpu.memory_space<vmem>>) attributes {dimension_semantics = [#tpu.dimension_semantics<parallel>], iteration_bounds = array<i64: 1>, scalar_prefetch = 0 : i64, scratch_operands = 0 : i64, tpu.core_type = #tpu.core_type<tc>, window_params = [{transform_indices = @transform_0, window_bounds = array<i64: 2, 32>}, {pipeline_mode = #tpu.pipeline_mode<synchronous>, transform_indices = @transform_1, window_bounds = array<i64: 32, 32>}, {pipeline_mode = #tpu.pipeline_mode<synchronous>, transform_indices = @transform_2, window_bounds = array<i64: 1, 32>}, {transform_indices = @transform_3, window_bounds = array<i64: 2, 8, 32>}, {transform_indices = @transform_4, window_bounds = array<i64: 2, 8>}]} {
    %c0 = arith.constant 0 : index
    %c0_0 = arith.constant 0 : index
    %0 = vector.load %arg1[%c0, %c0_0] : memref<2x32xf32, #tpu.memory_space<vmem>>, vector<2x32xf32>
    %c0_1 = arith.constant 0 : index
    %c0_2 = arith.constant 0 : index
    %1 = vector.load %arg2[%c0_1, %c0_2] : memref<32x32xf32, #tpu.memory_space<vmem>>, vector<32x32xf32>
    %cst = arith.constant dense<0.000000e+00> : vector<2x32xf32>
    %2 = tpu.matmul %0, %1, %cst {dimension_numbers = #tpu.dot_dimension_numbers<[1], [0], [0], [1], [0, 0, 1, 1], [], []>} : vector<2x32xf32>, vector<32x32xf32>, vector<2x32xf32> -> vector<2x32xf32>
    %c0_3 = arith.constant 0 : index
    %c0_4 = arith.constant 0 : index
    %3 = vector.load %arg3[%c0_3, %c0_4] : memref<1x32xf32, #tpu.memory_space<vmem>>, vector<1x32xf32>
    %4 = vector.broadcast %3 : vector<1x32xf32> to vector<2x32xf32>
    %5 = arith.addf %2, %4 : vector<2x32xf32>
    %c0_5 = arith.constant 0 : index
    %c0_6 = arith.constant 0 : index
    %c0_7 = arith.constant 0 : index
    %6 = vector.load %arg4[%c0_5, %c0_6, %c0_7] : memref<2x8x32xf32, #tpu.memory_space<vmem>>, vector<2x8x32xf32>
    %7 = vector.shape_cast %5 : vector<2x32xf32> to vector<2x1x32xf32>
    %8 = vector.broadcast %7 : vector<2x1x32xf32> to vector<2x8x32xf32>
    %9 = arith.mulf %6, %8 : vector<2x8x32xf32>
    %cst_8 = arith.constant dense<0.000000e+00> : vector<2x8xf32>
    %10 = vector.multi_reduction <add>, %9, %cst_8 [2] : vector<2x8x32xf32> to vector<2x8xf32>
    %cst_9 = arith.constant dense<0xFF800000> : vector<2xf32>
    %11 = vector.multi_reduction <maximumf>, %10, %cst_9 [1] : vector<2x8xf32> to vector<2xf32>
    %12 = vector.shape_cast %11 : vector<2xf32> to vector<2x1xf32>
    %13 = vector.broadcast %12 : vector<2x1xf32> to vector<2x8xf32>
    %14 = arith.subf %10, %13 : vector<2x8xf32>
    %15 = math.exp %14 : vector<2x8xf32>
    %cst_10 = arith.constant dense<0.000000e+00> : vector<2xf32>
    %16 = vector.multi_reduction <add>, %15, %cst_10 [1] : vector<2x8xf32> to vector<2xf32>
    %17 = vector.shape_cast %16 : vector<2xf32> to vector<2x1xf32>
    %18 = math.log %17 : vector<2x1xf32>
    %19 = vector.broadcast %18 : vector<2x1xf32> to vector<2x8xf32>
    %20 = arith.subf %14, %19 : vector<2x8xf32>
    %c0_11 = arith.constant 0 : index
    %c0_12 = arith.constant 0 : index
    %21 = vector.load %arg5[%c0_11, %c0_12] : memref<2x8xf32, #tpu.memory_space<vmem>>, vector<2x8xf32>
    tpu.vector_store %arg5[%c0_11, %c0_12], %20 {strides = array<i32>} : memref<2x8xf32, #tpu.memory_space<vmem>>, vector<2x8xf32>,
    return
  }
  func.func @transform_0(%arg0: i32) -> (i32, i32) {
    %c0_i32 = arith.constant 0 : i32
    %c0_i32_0 = arith.constant 0 : i32
    return %arg0, %c0_i32 : i32, i32
  }
  func.func @transform_1(%arg0: i32) -> (i32, i32) {
    %c0_i32 = arith.constant 0 : i32
    %c0_i32_0 = arith.constant 0 : i32
    %c0_i32_1 = arith.constant 0 : i32
    return %c0_i32, %c0_i32_0 : i32, i32
  }
  func.func @transform_2(%arg0: i32) -> (i32, i32) {
    %c0_i32 = arith.constant 0 : i32
    %c0_i32_0 = arith.constant 0 : i32
    %c0_i32_1 = arith.constant 0 : i32
    return %c0_i32, %c0_i32_0 : i32, i32
  }
  func.func @transform_3(%arg0: i32) -> (i32, i32, i32) {
    %c0_i32 = arith.constant 0 : i32
    %c0_i32_0 = arith.constant 0 : i32
    %c0_i32_1 = arith.constant 0 : i32
    return %arg0, %c0_i32, %c0_i32_0 : i32, i32, i32
  }
  func.func @transform_4(%arg0: i32) -> (i32, i32) {
    %c0_i32 = arith.constant 0 : i32
    %c0_i32_0 = arith.constant 0 : i32
    return %arg0, %c0_i32 : i32, i32
  }
}

</mosaic_0001>

<llo_original>
// kernel: tpu_custom_call.1
$region0: #{tpu_custom_call.1}
  #allocation0 [shape = 'u32[]', space=smem, size = 0x4, offset = 0x4, fixed_abs, tag = 'smem constant byte address 0x4 - core index']
  #allocation1 [shape = 'u32[72,128]{1,0:T(1,128)}', space=vmem, size = 0x9000, scoped, tag = 'internal scratch']
  %s0 = inlined_call_operand.hbm [shape: f32[2,32], index: 0, kind: input, shape index: {}]
  %s1 = inlined_call_operand.hbm [shape: f32[32,32], index: 1, kind: input, shape index: {}]
  %s2 = inlined_call_operand.vmem [shape: f32[1,32], index: 2, kind: input, shape index: {}]
  %s3 = inlined_call_operand.hbm [shape: f32[2,8,32], index: 3, kind: input, shape index: {}]
  %s4 = inlined_call_operand.hbm [shape: f32[2,8], index: 4, kind: output, shape index: {}]
  %s5 = sld [smem:[#allocation0]]
  $region38: #{tpu_custom_call.1} parent=0
    _
  %s7 = ssub.s32 1, %s5
  %s8 = scalar_select 0, %s7, %s5
  $region1: #{tpu_custom_call.1} parent=0
    #allocation2 [shape = 'u8[1024]{0}', space=vmem, size = 0x400, scoped, tag = 'input window, operand 0, single buffered']
    #allocation3 [shape = 's32[1]{0}', space=sflag, size = 0x4, scoped, tag = 'scoped memory for tpu_custom_call.1']
    #allocation4 [shape = 's32[1]{0}', space=sflag, size = 0x4, scoped, tag = 'scoped memory for tpu_custom_call.1']
    #allocation5 [shape = 'u8[16384]{0}', space=vmem, size = 0x4000, scoped, tag = 'input window, operand 1, single buffered']
    #allocation6 [shape = 's32[1]{0}', space=sflag, size = 0x4, scoped, tag = 'scoped memory for tpu_custom_call.1']
    #allocation7 [shape = 'u8[8192]{0}', space=vmem, size = 0x2000, scoped, tag = 'input window, operand 3, single buffered']
    #allocation8 [shape = 'u8[1024]{0}', space=vmem, size = 0x400, scoped, tag = 'output window, operand 0, single buffered']
    %9 = vsyncpa [#allocation3], 0
    %10 = vsyncpa [#allocation6], 0
    %11 = vsyncpa [#allocation4], 0
    // Predicated region
    $region2: #{tpu_custom_call.1} parent=1 // pred_check
      _
    $region3: #{tpu_custom_call.1} parent=1 // pred_check_branch
      %13 = sbr.rel (0) target = $region5
    $region4: #{tpu_custom_call.1} parent=1 // pred_region
      %15 = vsyncadd [#allocation3], 0
      %s17 = sshll.u32 %s0, 4
      %s18 = int_to_ptr.hbm [resolvable:$true] %s17
      %s19 = sshll.u32 [#allocation2], 4
      %s20 = int_to_ptr.vmem [resolvable:$true] %s19
      %22 = dma.hbm_to_vmem [thread:$0]  %s18, 32, %s20, [#allocation3]
    $region5: #{tpu_custom_call.1} parent=1 // pred_fallthru
      _
    // Predicated region
    $region6: #{tpu_custom_call.1} parent=1 // pred_check
      _
    $region7: #{tpu_custom_call.1} parent=1 // pred_check_branch
      %24 = sbr.rel (0) target = $region9
    $region8: #{tpu_custom_call.1} parent=1 // pred_region
      %26 = vsyncadd [#allocation6], 0
      %s27 = sshll.u32 %s1, 4
      %s28 = int_to_ptr.hbm [resolvable:$true] %s27
      %s29 = sshll.u32 [#allocation5], 4
      %s30 = int_to_ptr.vmem [resolvable:$true] %s29
      %35 = dma.hbm_to_vmem [thread:$0]  %s28, 512, %s30, [#allocation6], 128, 128, 8
    $region9: #{tpu_custom_call.1} parent=1 // pred_fallthru
      _
    // Predicated region
    $region10: #{tpu_custom_call.1} parent=1 // pred_check
      _
    $region11: #{tpu_custom_call.1} parent=1 // pred_check_branch
      %37 = sbr.rel (0) target = $region13
    $region12: #{tpu_custom_call.1} parent=1 // pred_region
      _
    $region13: #{tpu_custom_call.1} parent=1 // pred_fallthru
      _
    // Predicated region
    $region14: #{tpu_custom_call.1} parent=1 // pred_check
      _
    $region15: #{tpu_custom_call.1} parent=1 // pred_check_branch
      %39 = sbr.rel (0) target = $region17
    $region16: #{tpu_custom_call.1} parent=1 // pred_region
      %41 = vsyncadd [#allocation6], 0
      %s42 = sshll.u32 %s3, 4
      %s43 = int_to_ptr.hbm [resolvable:$true] %s42
      %s44 = sshll.u32 [#allocation7], 4
      %s45 = int_to_ptr.vmem [resolvable:$true] %s44
      %50 = dma.hbm_to_vmem [thread:$0]  %s43, 256, %s45, [#allocation6], 128, 128, 8
    $region17: #{tpu_custom_call.1} parent=1 // pred_fallthru
      _
    // Predicated region
    $region18: #{tpu_custom_call.1} parent=1 // pred_check
      _
    $region19: #{tpu_custom_call.1} parent=1 // pred_check_branch
      %52 = sbr.rel (0) target = $region21
    $region20: #{tpu_custom_call.1} parent=1 // pred_region
      %54 = dma.done [#allocation3], 32
    $region21: #{tpu_custom_call.1} parent=1 // pred_fallthru
      _
    // Predicated region
    $region22: #{tpu_custom_call.1} parent=1 // pred_check
      _
    $region23: #{tpu_custom_call.1} parent=1 // pred_check_branch
      %56 = sbr.rel (0) target = $region25
    $region24: #{tpu_custom_call.1} parent=1 // pred_region
      %58 = dma.done [#allocation6], 512
    $region25: #{tpu_custom_call.1} parent=1 // pred_fallthru
      _
    // Predicated region
    $region26: #{tpu_custom_call.1} parent=1 // pred_check
      _
    $region27: #{tpu_custom_call.1} parent=1 // pred_check_branch
      %60 = sbr.rel (0) target = $region29
    $region28: #{tpu_custom_call.1} parent=1 // pred_region
      %62 = dma.done [#allocation6], 256
    $region29: #{tpu_custom_call.1} parent=1 // pred_fallthru
      _
    %v63 = vld [vmem:[#allocation2] sm:$0x3]
    %v64 = vld [vmem:[#allocation5] sm:$0xff]
    %v65 = vld [vmem:[#allocation5 + $0x8] sm:$0xff]
    %v66 = vld [vmem:[#allocation5 + $0x10] sm:$0xff]
    %v67 = vld [vmem:[#allocation5 + $0x18] sm:$0xff]
    %v68 = vld [vmem:[%s2] sm:$0x1]
    %v70 = vperm.slane %v68, 0
    %vm72 = vcmask 261120
    %v74 = vsel %vm72, %v63, 0
    %76 = vmatpush.msra.mxu0 0.0
    %77 = vmatpush.msra.mxu0 0.0
    %78 = vmatpush.msra.mxu0 0.0
    %79 = vmatpush.msra.mxu0 0.0
    %80 = vmatpush.msra.mxu0 0.0
    %81 = vmatpush.msra.mxu0 0.0
    %82 = vmatpush.msra.mxu0 0.0
    %83 = vmatpush.msra.mxu0 0.0
    %84 = vmatpush.msra.mxu0 0.0
    %85 = vmatpush.msra.mxu0 0.0
    %86 = vmatpush.msra.mxu0 0.0
    %87 = vmatpush.msra.mxu0 0.0
    %88 = vmatpush.msra.mxu0 %v67
    %89 = vmatpush.msra.mxu0 %v66
    %90 = vmatpush.msra.mxu0 %v65
    %91 = vmatpush.msra.mxu0 %v64
    %92 = vmatmul.f32.gmra.mxu0 %v74
    %v93 = vpop.f32.mrf.mxu0
    %v94 = vadd.f32 %v70, %v93
    %95 = vdwg.mxu0
    %v96 = vld [vmem:[#allocation7] sm:$0xff]
    %v97 = vld [vmem:[#allocation7 + $0x8] sm:$0xff]
    %v99 = vrot.slane %v94, 1
    %v100 = vperm.slane %v94, 0
    %v101 = vperm.slane %v99, 0
    %v104 = vmul.f32 %v96, %v100
    %v105 = vmul.f32 %v97, %v101
    %v106 = vsel %vm72, %v104, 0.0
    %107 = vadd.xlane.f32.xlu0 %v106
    %v108 = vpop.xlane.xlu0 %107
    %v109 = vsel %vm72, %v105, 0.0
    %110 = vadd.xlane.f32.xlu0 %v109
    %v111 = vpop.xlane.xlu0 %110
    %v114 = vlaneseq
    %v115 = vand.u32 %v114, 127
    %v116 = vperm.slane %v108, %v115
    %v117 = vperm.slane %v111, %v115
    %vm118 = vcmask 1041409
    %v119 = vsel %vm118, %v117, %v116
    %vm121 = vcmask 58368
    %v122 = vsel %vm121, %v119, -inf
    %123 = vmax.xlane.f32.xlu0 %v122
    %v124 = vpop.xlane.xlu0 %123
    %v126 = vperm.slane %v124, 0
    %v127 = vperm.slane %v124, 1
    %v130 = vsub.f32 %v108, %v126
    %v131 = vsub.f32 %v111, %v127
    %v132 = vmul.f32 %v130, 1.442695
    %v133 = vpow.pop %v132
    %v134 = vmul.f32 %v131, 1.442695
    %v135 = vpow.pop %v134
    %138 = vset.pattern.permute.xlu0 0
    %139 = vperm.xlu0 %138, %v133
    %v140 = vpop.permute.xlu0 %139
    %141 = vset.pattern.permute.xlu0 0
    %142 = vperm.xlu0 %141, %v135
    %v143 = vpop.permute.xlu0 %142
    %v144 = vperm.slane %v140, %v115
    %v145 = vperm.slane %v143, %v115
    %v146 = vsel %vm118, %v145, %v144
    %v148 = vsel %vm121, %v146, 0.0
    %149 = vadd.xlane.f32.xlu0 %v148
    %v150 = vpop.xlane.xlu0 %149
    %v151 = vlog2.pop %v150
    %v152 = vmul.f32 %v151, 0.6931472
    %v154 = vperm.slane %v152, 0
    %v155 = vperm.slane %v152, 1
    %v158 = vsub.f32 %v130, %v154
    %v159 = vsub.f32 %v131, %v155
    %162 = vset.pattern.permute.xlu0 0
    %163 = vperm.xlu0 %162, %v158
    %v164 = vpop.permute.xlu0 %163
    %165 = vset.pattern.permute.xlu0 0
    %166 = vperm.xlu0 %165, %v159
    %v167 = vpop.permute.xlu0 %166
    %v168 = vperm.slane %v164, %v115
    %v169 = vperm.slane %v167, %v115
    %v170 = vsel %vm118, %v169, %v168
    %172 = vst.msk [vmem:[#allocation8] sm:$0x3] %vm121, %v170
    // Predicated region
    $region30: #{tpu_custom_call.1} parent=1 // pred_check
      _
    $region31: #{tpu_custom_call.1} parent=1 // pred_check_branch
      %174 = sbr.rel (0) target = $region33
    $region32: #{tpu_custom_call.1} parent=1 // pred_region
      %176 = vsyncadd [#allocation4], 0
      %s178 = sshll.u32 [#allocation8], 4
      %s179 = int_to_ptr.vmem [resolvable:$true] %s178
      %s180 = sshll.u32 %s4, 4
      %s181 = int_to_ptr.hbm [resolvable:$true] %s180
      %183 = dma.vmem_to_hbm [thread:$0]  %s179, 32, %s181, [#allocation4]
    $region33: #{tpu_custom_call.1} parent=1 // pred_fallthru
      _
    // Predicated region
    $region34: #{tpu_custom_call.1} parent=1 // pred_check
      _
    $region35: #{tpu_custom_call.1} parent=1 // pred_check_branch
      %185 = sbr.rel (0) target = $region37
    $region36: #{tpu_custom_call.1} parent=1 // pred_region
      %187 = dma.done [#allocation4], 32
    $region37: #{tpu_custom_call.1} parent=1 // pred_fallthru
      _
    %188 = vsyncpa [#allocation3], 1
    %189 = vsyncpa [#allocation6], 1
    %190 = vsyncpa [#allocation4], 1

</llo_original>
